<compile_context>
chip_gen: v5e
topology: v5e:2x2
jax: 0.10.0
libtpu: 0.0.40
codegen_flags: <defaults>
</compile_context>

<pallas_src>
import jax
import jax.numpy as jnp
from jax.experimental import pallas as pl
from jax.experimental.pallas import tpu as pltpu


def _head_kernel(x_ref, w1_ref, b1_ref, w2_ref, b2_ref, o_ref, acc_ref):
    k = pl.program_id(1)

    @pl.when(k == 0)
    def _init():
        acc_ref[...] = jnp.zeros_like(acc_ref)

    # dense: (tB, tK) @ (tK, H) on the MXU, f32 accumulation in VMEM scratch.
    x = x_ref[...].astype(w1_ref.dtype)
    acc_ref[...] += jnp.dot(x, w1_ref[...], preferred_element_type=jnp.float32)

    @pl.when(k == pl.num_programs(1) - 1)
    def _finalize():
        h = jnp.tanh(acc_ref[...] + b1_ref[...])                 # EUP, f32
        out = jnp.dot(h.astype(w2_ref.dtype), w2_ref[...],
                      preferred_element_type=jnp.float32) + b2_ref[...]
        o_ref[...] = out.astype(o_ref.dtype)


def _round_up(x, m):
    return ((x + m - 1) // m) * m


def mocobert_classification_head(features, w_dense, b_dense, w_out, b_out,
                                 *, compute_dtype=jnp.bfloat16,
                                 block_b=256, max_block_k=1024):
    """features: (B, S, H); w_dense: (H, H) in (in,out); w_out: (H, L) in (in,out)."""
    B, S, H = features.shape
    L = w_out.shape[1]
    out_dtype = features.dtype

    # ---- label-dim padding: lane-dense (multiple of 128) output tile --------
    Lp = _round_up(L, 128)
    if Lp != L:
        w_out = jnp.pad(w_out, ((0, 0), (0, Lp - L)))
        b_out = jnp.pad(b_out, ((0, Lp - L),))

    # Low-precision weights for the MXU; f32 biases (added to f32 accumulators).
    w1 = w_dense.astype(compute_dtype)
    w2 = w_out.astype(compute_dtype)
    b1 = b_dense.astype(jnp.float32).reshape(1, H)
    b2 = b_out.astype(jnp.float32).reshape(1, Lp)

    # ---- batch tiling --------------------------------------------------------
    tB = B if B <= block_b else block_b          # block_b is a multiple of 8
    num_b = pl.cdiv(B, tB)

    # ---- CLS slice + K (hidden_in) tiling ------------------------------------
    if H % 128 == 0:
        # Fused CLS slice: view features as (B, S*H); the x BlockSpec DMAs only
        # columns [0:H], i.e. sequence position 0.  No extra XLA gather pass.
        x2d = features.reshape(B, S * H)
        tK = H
        if tK > max_block_k:
            # largest multiple of 128 that divides H and is <= max_block_k
            tK = 128
            for cand in range(max_block_k, 127, -128):
                if H % cand == 0:
                    tK = cand
                    break
        num_k = H // tK
    else:
        # Fallback for non-lane-aligned H (e.g. the tiny demo): slice in the
        # wrapper and run a single K step over the full hidden dim.
        x2d = features[:, 0, :]
        tK, num_k = H, 1

    grid = (num_b, num_k)

    out_padded = pl.pallas_call(
        _head_kernel,
        out_shape=jax.ShapeDtypeStruct((B, Lp), out_dtype),
        grid=grid,
        in_specs=[
            pl.BlockSpec((tB, tK), lambda i, k: (i, k)),      # x / CLS tile
            pl.BlockSpec((tK, H), lambda i, k: (k, 0)),       # W_dense tile
            pl.BlockSpec((1, H), lambda i, k: (0, 0)),        # b_dense (resident)
            pl.BlockSpec((H, Lp), lambda i, k: (0, 0)),       # W_out   (resident)
            pl.BlockSpec((1, Lp), lambda i, k: (0, 0)),       # b_out   (resident)
        ],
        out_specs=pl.BlockSpec((tB, Lp), lambda i, k: (i, 0)),
        scratch_shapes=[pltpu.VMEM((tB, H), jnp.float32)],    # dense accumulator
        compiler_params=pltpu.CompilerParams(
            dimension_semantics=("parallel", "arbitrary"),
            vmem_limit_bytes=48 * 1024 * 1024,
        ),
    )(x2d, w1, b1, w2, b2)

    return out_padded[:, :L] if Lp != L else out_padded


if __name__ == "__main__":
    # Small shapes consistent with the module: batch=2, seq=8, hidden=32, labels=4.
    B, S, H, L = 2, 8, 32, 4
    key = jax.random.PRNGKey(0)
    k1, k2, k3, k4, k5 = jax.random.split(key, 5)

    features = jax.random.normal(k1, (B, S, H), dtype=jnp.float32)
    # Deterministic synthetic parameters (nn.Linear(H, H) and nn.Linear(H, L)),
    # stored in (in, out) layout.
    w_dense = jax.random.normal(k2, (H, H), dtype=jnp.float32) * 0.05
    b_dense = jax.random.normal(k3, (H,), dtype=jnp.float32) * 0.05
    w_out   = jax.random.normal(k4, (H, L), dtype=jnp.float32) * 0.05
    b_out   = jax.random.normal(k5, (L,), dtype=jnp.float32) * 0.05

    out = mocobert_classification_head(features, w_dense, b_dense, w_out, b_out)
    out = jax.block_until_ready(out)
    assert out.shape == (B, L)

    # Pure-JAX reference mimicking the kernel's mixed precision
    # (bf16 operands, f32 accumulation).
    f32, bf16 = jnp.float32, jnp.bfloat16
    cls = features[:, 0, :]
    w1b = w_dense.astype(bf16).astype(f32)
    w2b = w_out.astype(bf16).astype(f32)
    h_ref = jnp.tanh(cls.astype(bf16).astype(f32) @ w1b + b_dense)
    ref = h_ref.astype(bf16).astype(f32) @ w2b + b_out
    assert jnp.allclose(out, ref, atol=1e-2, rtol=1e-2), "kernel/reference mismatch"

    print("KERNEL_OK")
</pallas_src>

<mosaic_0001>
module attributes {stable_mosaic.version = 11 : i64} {
  func.func @_head_kernel(%arg0: i32, %arg1: i32, %arg2: memref<2x32xf32, #tpu.memory_space<vmem>>, %arg3: memref<32x32xbf16, #tpu.memory_space<vmem>>, %arg4: memref<1x32xf32, #tpu.memory_space<vmem>>, %arg5: memref<32x128xbf16, #tpu.memory_space<vmem>>, %arg6: memref<1x128xf32, #tpu.memory_space<vmem>>, %arg7: memref<2x128xf32, #tpu.memory_space<vmem>>, %arg8: memref<2x32xf32, #tpu.memory_space<vmem>>) attributes {dimension_semantics = [#tpu.dimension_semantics<parallel>, #tpu.dimension_semantics<arbitrary>], iteration_bounds = array<i64: 1, 1>, scalar_prefetch = 0 : i64, scratch_operands = 1 : i64, tpu.core_type = #tpu.core_type<tc>, window_params = [{transform_indices = @transform_0, window_bounds = array<i64: 2, 32>}, {transform_indices = @transform_1, window_bounds = array<i64: 32, 32>}, {pipeline_mode = #tpu.pipeline_mode<synchronous>, transform_indices = @transform_2, window_bounds = array<i64: 1, 32>}, {pipeline_mode = #tpu.pipeline_mode<synchronous>, transform_indices = @transform_3, window_bounds = array<i64: 32, 128>}, {pipeline_mode = #tpu.pipeline_mode<synchronous>, transform_indices = @transform_4, window_bounds = array<i64: 1, 128>}, {transform_indices = @transform_5, window_bounds = array<i64: 2, 128>}]} {
    %c0_i32 = arith.constant 0 : i32
    %0 = arith.cmpi eq, %arg1, %c0_i32 : i32
    %1 = arith.extui %0 : i1 to i32
    %c0_i32_0 = arith.constant 0 : i32
    %2 = arith.cmpi ne, %1, %c0_i32_0 : i32
    scf.if %2 {
      %cst_10 = arith.constant 0.000000e+00 : f32
      %13 = vector.broadcast %cst_10 : f32 to vector<2x32xf32>
      %c0_11 = arith.constant 0 : index
      %c0_12 = arith.constant 0 : index
      %14 = vector.load %arg8[%c0_11, %c0_12] : memref<2x32xf32, #tpu.memory_space<vmem>>, vector<2x32xf32>
      tpu.vector_store %arg8[%c0_11, %c0_12], %13 {strides = array<i32>} : memref<2x32xf32, #tpu.memory_space<vmem>>, vector<2x32xf32>,
    } else {
    }
    %c0 = arith.constant 0 : index
    %c0_1 = arith.constant 0 : index
    %3 = vector.load %arg2[%c0, %c0_1] : memref<2x32xf32, #tpu.memory_space<vmem>>, vector<2x32xf32>
    %4 = arith.truncf %3 : vector<2x32xf32> to vector<2x32xbf16>
    %c0_2 = arith.constant 0 : index
    %c0_3 = arith.constant 0 : index
    %5 = vector.load %arg8[%c0_2, %c0_3] : memref<2x32xf32, #tpu.memory_space<vmem>>, vector<2x32xf32>
    %c0_4 = arith.constant 0 : index
    %c0_5 = arith.constant 0 : index
    %6 = vector.load %arg3[%c0_4, %c0_5] : memref<32x32xbf16, #tpu.memory_space<vmem>>, vector<32x32xbf16>
    %cst = arith.constant dense<0.000000e+00> : vector<2x32xf32>
    %7 = tpu.matmul %4, %6, %cst {dimension_numbers = #tpu.dot_dimension_numbers<[1], [0], [0], [1], [0, 0, 1, 1], [], []>} : vector<2x32xbf16>, vector<32x32xbf16>, vector<2x32xf32> -> vector<2x32xf32>
    %8 = arith.addf %5, %7 : vector<2x32xf32>
    %c0_6 = arith.constant 0 : index
    %c0_7 = arith.constant 0 : index
    %9 = vector.load %arg8[%c0_6, %c0_7] : memref<2x32xf32, #tpu.memory_space<vmem>>, vector<2x32xf32>
    tpu.vector_store %arg8[%c0_6, %c0_7], %8 {strides = array<i32>} : memref<2x32xf32, #tpu.memory_space<vmem>>, vector<2x32xf32>,
    %c0_i32_8 = arith.constant 0 : i32
    %10 = arith.cmpi eq, %arg1, %c0_i32_8 : i32
    %11 = arith.extui %10 : i1 to i32
    %c0_i32_9 = arith.constant 0 : i32
    %12 = arith.cmpi ne, %11, %c0_i32_9 : i32
    scf.if %12 {
      %c0_10 = arith.constant 0 : index
      %c0_11 = arith.constant 0 : index
      %13 = vector.load %arg8[%c0_10, %c0_11] : memref<2x32xf32, #tpu.memory_space<vmem>>, vector<2x32xf32>
      %c0_12 = arith.constant 0 : index
      %c0_13 = arith.constant 0 : index
      %14 = vector.load %arg4[%c0_12, %c0_13] : memref<1x32xf32, #tpu.memory_space<vmem>>, vector<1x32xf32>
      %15 = vector.broadcast %14 : vector<1x32xf32> to vector<2x32xf32>
      %16 = arith.addf %13, %15 : vector<2x32xf32>
      %17 = math.tanh %16 : vector<2x32xf32>
      %18 = arith.truncf %17 : vector<2x32xf32> to vector<2x32xbf16>
      %c0_14 = arith.constant 0 : index
      %c0_15 = arith.constant 0 : index
      %19 = vector.load %arg5[%c0_14, %c0_15] : memref<32x128xbf16, #tpu.memory_space<vmem>>, vector<32x128xbf16>
      %cst_16 = arith.constant dense<0.000000e+00> : vector<2x128xf32>
      %20 = tpu.matmul %18, %19, %cst_16 {dimension_numbers = #tpu.dot_dimension_numbers<[1], [0], [0], [1], [0, 0, 1, 1], [], []>} : vector<2x32xbf16>, vector<32x128xbf16>, vector<2x128xf32> -> vector<2x128xf32>
      %c0_17 = arith.constant 0 : index
      %c0_18 = arith.constant 0 : index
      %21 = vector.load %arg6[%c0_17, %c0_18] : memref<1x128xf32, #tpu.memory_space<vmem>>, vector<1x128xf32>
      %22 = vector.broadcast %21 : vector<1x128xf32> to vector<2x128xf32>
      %23 = arith.addf %20, %22 : vector<2x128xf32>
      %c0_19 = arith.constant 0 : index
      %c0_20 = arith.constant 0 : index
      %24 = vector.load %arg7[%c0_19, %c0_20] : memref<2x128xf32, #tpu.memory_space<vmem>>, vector<2x128xf32>
      tpu.vector_store %arg7[%c0_19, %c0_20], %23 {strides = array<i32>} : memref<2x128xf32, #tpu.memory_space<vmem>>, vector<2x128xf32>,
    } else {
    }
    return
  }
  func.func @transform_0(%arg0: i32, %arg1: i32) -> (i32, i32) {
    %c0_i32 = arith.constant 0 : i32
    return %arg0, %arg1 : i32, i32
  }
  func.func @transform_1(%arg0: i32, %arg1: i32) -> (i32, i32) {
    %c0_i32 = arith.constant 0 : i32
    %c0_i32_0 = arith.constant 0 : i32
    return %arg1, %c0_i32 : i32, i32
  }
  func.func @transform_2(%arg0: i32, %arg1: i32) -> (i32, i32) {
    %c0_i32 = arith.constant 0 : i32
    %c0_i32_0 = arith.constant 0 : i32
    %c0_i32_1 = arith.constant 0 : i32
    return %c0_i32, %c0_i32_0 : i32, i32
  }
  func.func @transform_3(%arg0: i32, %arg1: i32) -> (i32, i32) {
    %c0_i32 = arith.constant 0 : i32
    %c0_i32_0 = arith.constant 0 : i32
    %c0_i32_1 = arith.constant 0 : i32
    return %c0_i32, %c0_i32_0 : i32, i32
  }
  func.func @transform_4(%arg0: i32, %arg1: i32) -> (i32, i32) {
    %c0_i32 = arith.constant 0 : i32
    %c0_i32_0 = arith.constant 0 : i32
    %c0_i32_1 = arith.constant 0 : i32
    return %c0_i32, %c0_i32_0 : i32, i32
  }
  func.func @transform_5(%arg0: i32, %arg1: i32) -> (i32, i32) {
    %c0_i32 = arith.constant 0 : i32
    %c0_i32_0 = arith.constant 0 : i32
    return %arg0, %c0_i32 : i32, i32
  }
}

</mosaic_0001>

<llo_original>
// kernel: tpu_custom_call.1
$region0: #{tpu_custom_call.1}
  #allocation0 [shape = 'u32[]', space=smem, size = 0x4, offset = 0x4, fixed_abs, tag = 'smem constant byte address 0x4 - core index']
  #allocation1 [shape = 'u32[72,128]{1,0:T(1,128)}', space=vmem, size = 0x9000, scoped, tag = 'internal scratch']
  #allocation2 [shape = 'f32[2,32]{1,0:T(2,128)}', space=vmem, size = 0x400, scoped, tag = 'scratch operand']
  %s0 = inlined_call_operand.hbm [shape: f32[2,32], index: 0, kind: input, shape index: {}]
  %s1 = inlined_call_operand.hbm [shape: bf16[32,32], index: 1, kind: input, shape index: {}]
  %s2 = inlined_call_operand.vmem [shape: f32[1,32], index: 2, kind: input, shape index: {}]
  %s3 = inlined_call_operand.hbm [shape: bf16[32,128], index: 3, kind: input, shape index: {}]
  %s4 = inlined_call_operand.vmem [shape: f32[1,128], index: 4, kind: input, shape index: {}]
  %s5 = inlined_call_operand.hbm [shape: f32[2,128], index: 5, kind: output, shape index: {}]
  %s6 = sld [smem:[#allocation0]]
  $region50: #{tpu_custom_call.1} parent=0
    _
  %s8 = ssub.s32 1, %s6
  %s9 = scalar_select 0, %s8, %s6
  $region1: #{tpu_custom_call.1} parent=0
    #allocation3 [shape = 'u8[1024]{0}', space=vmem, size = 0x400, scoped, tag = 'input window, operand 0, single buffered']
    #allocation4 [shape = 's32[1]{0}', space=sflag, size = 0x4, scoped, tag = 'scoped memory for tpu_custom_call.1']
    #allocation5 [shape = 's32[1]{0}', space=sflag, size = 0x4, scoped, tag = 'scoped memory for tpu_custom_call.1']
    #allocation6 [shape = 'u8[8192]{0}', space=vmem, size = 0x2000, scoped, tag = 'input window, operand 1, single buffered']
    #allocation7 [shape = 's32[1]{0}', space=sflag, size = 0x4, scoped, tag = 'scoped memory for tpu_custom_call.1']
    #allocation8 [shape = 'u8[8192]{0}', space=vmem, size = 0x2000, scoped, tag = 'input window, operand 3, single buffered']
    #allocation9 [shape = 'u8[1024]{0}', space=vmem, size = 0x400, scoped, tag = 'output window, operand 0, single buffered']
    %10 = vsyncpa [#allocation4], 0
    %11 = vsyncpa [#allocation7], 0
    %12 = vsyncpa [#allocation5], 0
    // Predicated region
    $region2: #{tpu_custom_call.1} parent=1 // pred_check
      _
    $region3: #{tpu_custom_call.1} parent=1 // pred_check_branch
      %14 = sbr.rel (0) target = $region5
    $region4: #{tpu_custom_call.1} parent=1 // pred_region
      %16 = vsyncadd [#allocation4], 0
      %s18 = sshll.u32 %s0, 4
      %s19 = int_to_ptr.hbm [resolvable:$true] %s18
      %s20 = sshll.u32 [#allocation3], 4
      %s21 = int_to_ptr.vmem [resolvable:$true] %s20
      %23 = dma.hbm_to_vmem [thread:$0]  %s19, 32, %s21, [#allocation4]
    $region5: #{tpu_custom_call.1} parent=1 // pred_fallthru
      _
    // Predicated region
    $region6: #{tpu_custom_call.1} parent=1 // pred_check
      _
    $region7: #{tpu_custom_call.1} parent=1 // pred_check_branch
      %25 = sbr.rel (0) target = $region9
    $region8: #{tpu_custom_call.1} parent=1 // pred_region
      %27 = vsyncadd [#allocation7], 0
      %s28 = sshll.u32 %s1, 4
      %s29 = int_to_ptr.hbm [resolvable:$true] %s28
      %s30 = sshll.u32 [#allocation6], 4
      %s31 = int_to_ptr.vmem [resolvable:$true] %s30
      %36 = dma.hbm_to_vmem [thread:$0]  %s29, 256, %s31, [#allocation7], 64, 64, 4
    $region9: #{tpu_custom_call.1} parent=1 // pred_fallthru
      _
    // Predicated region
    $region10: #{tpu_custom_call.1} parent=1 // pred_check
      _
    $region11: #{tpu_custom_call.1} parent=1 // pred_check_branch
      %38 = sbr.rel (0) target = $region13
    $region12: #{tpu_custom_call.1} parent=1 // pred_region
      _
    $region13: #{tpu_custom_call.1} parent=1 // pred_fallthru
      _
    // Predicated region
    $region14: #{tpu_custom_call.1} parent=1 // pred_check
      _
    $region15: #{tpu_custom_call.1} parent=1 // pred_check_branch
      %40 = sbr.rel (0) target = $region17
    $region16: #{tpu_custom_call.1} parent=1 // pred_region
      %42 = vsyncadd [#allocation7], 0
      %s43 = sshll.u32 %s3, 4
      %s44 = int_to_ptr.hbm [resolvable:$true] %s43
      %s45 = sshll.u32 [#allocation8], 4
      %s46 = int_to_ptr.vmem [resolvable:$true] %s45
      %51 = dma.hbm_to_vmem [thread:$0]  %s44, 256, %s46, [#allocation7], 64, 64, 4
    $region17: #{tpu_custom_call.1} parent=1 // pred_fallthru
      _
    // Predicated region
    $region18: #{tpu_custom_call.1} parent=1 // pred_check
      _
    $region19: #{tpu_custom_call.1} parent=1 // pred_check_branch
      %53 = sbr.rel (0) target = $region21
    $region20: #{tpu_custom_call.1} parent=1 // pred_region
      _
    $region21: #{tpu_custom_call.1} parent=1 // pred_fallthru
      _
    // Predicated region
    $region22: #{tpu_custom_call.1} parent=1 // pred_check
      _
    $region23: #{tpu_custom_call.1} parent=1 // pred_check_branch
      %55 = sbr.rel (0) target = $region25
    $region24: #{tpu_custom_call.1} parent=1 // pred_region
      %57 = dma.done [#allocation4], 32
    $region25: #{tpu_custom_call.1} parent=1 // pred_fallthru
      _
    // Predicated region
    $region26: #{tpu_custom_call.1} parent=1 // pred_check
      _
    $region27: #{tpu_custom_call.1} parent=1 // pred_check_branch
      %59 = sbr.rel (0) target = $region29
    $region28: #{tpu_custom_call.1} parent=1 // pred_region
      %61 = dma.done [#allocation7], 256
    $region29: #{tpu_custom_call.1} parent=1 // pred_fallthru
      _
    // Predicated region
    $region30: #{tpu_custom_call.1} parent=1 // pred_check
      _
    $region31: #{tpu_custom_call.1} parent=1 // pred_check_branch
      %63 = sbr.rel (0) target = $region33
    $region32: #{tpu_custom_call.1} parent=1 // pred_region
      %65 = dma.done [#allocation7], 256
    $region33: #{tpu_custom_call.1} parent=1 // pred_fallthru
      _
    %p67 = scmp.eq.s32.totalorder 0, 0
    // Predicated region
    $region34: #{tpu_custom_call.1} parent=1 // pred_check
      %p68 = pneg %p67
    $region35: #{tpu_custom_call.1} parent=1 // pred_check_branch
      %70 = sbr.rel (%p68) target = $region37
    $region36: #{tpu_custom_call.1} parent=1 // pred_region
      %vm71 = vcmask 254976
      %72 = vst.msk [vmem:[#allocation2] sm:$0x3] %vm71, 0.0
    $region37: #{tpu_custom_call.1} parent=1 // pred_fallthru
      _
    %v73 = vld [vmem:[#allocation3] sm:$0x3]
    %v74 = vpack.c.bf16 %v73, %v73
    %v75 = vld [vmem:[#allocation2] sm:$0x3]
    %v76 = vld [vmem:[#allocation6] sm:$0xf]
    %v77 = vld [vmem:[#allocation6 + $0x4] sm:$0xf]
    %v78 = vld [vmem:[#allocation6 + $0x8] sm:$0xf]
    %v79 = vld [vmem:[#allocation6 + $0xc] sm:$0xf]
    %v84 = vunpack.c.l.b16 %v76
    %v85 = vunpack.c.l.b16 %v77
    %v86 = vunpack.c.l.b16 %v78
    %v87 = vunpack.c.l.b16 %v79
    %v88 = vpack.c.b16 %v85, %v84
    %v89 = vpack.c.b16 %v87, %v86
    %vm92 = vcmask 261120
    %v94 = vsel %vm92, %v74, 0
    %96 = vmatpush.bf16.msra.mxu0 0
    %97 = vmatpush.bf16.msra.mxu0 0
    %98 = vmatpush.bf16.msra.mxu0 0
    %99 = vmatpush.bf16.msra.mxu0 0
    %100 = vmatpush.bf16.msra.mxu0 0
    %101 = vmatpush.bf16.msra.mxu0 0
    %102 = vmatpush.bf16.msra.mxu0 %v89
    %103 = vmatpush.bf16.msra.mxu0 %v88
    %104 = vmatmul.bf16.gmra.mxu0 %v94
    %v105 = vpop.f32.mrf.mxu0
    %v106 = vadd.f32 0.0, %v105
    %v107 = vpop.f32.mrf.mxu0
    %108 = vdwg.mxu0
    %v109 = vadd.f32 %v75, %v106
    %vm110 = vcmask 254976
    %111 = vst.msk [vmem:[#allocation2] sm:$0x3] %vm110, %v109
    // Predicated region
    $region38: #{tpu_custom_call.1} parent=1 // pred_check
      %p112 = pneg %p67
    $region39: #{tpu_custom_call.1} parent=1 // pred_check_branch
      %114 = sbr.rel (%p112) target = $region41
    $region40: #{tpu_custom_call.1} parent=1 // pred_region
      %v115 = vld [vmem:[#allocation2] sm:$0x3]
      %v116 = vld [vmem:[%s2] sm:$0x1]
      %v118 = vperm.slane %v116, 0
      %v120 = vadd.f32 %v115, %v118
      %v121 = vtanh.pop %v120
      %v122 = vpack.c.bf16 %v121, %v121
      %v123 = vld [vmem:[#allocation8] sm:$0xf]
      %v124 = vld [vmem:[#allocation8 + $0x4] sm:$0xf]
      %v125 = vld [vmem:[#allocation8 + $0x8] sm:$0xf]
      %v126 = vld [vmem:[#allocation8 + $0xc] sm:$0xf]
      %v127 = vld [vmem:[%s4] sm:$0x1]
      %v129 = vperm.slane %v127, 0
      %v135 = vunpack.c.l.b16 %v123
      %v136 = vunpack.c.l.b16 %v124
      %v137 = vunpack.c.l.b16 %v125
      %v138 = vunpack.c.l.b16 %v126
      %v139 = vpack.c.b16 %v136, %v135
      %v140 = vpack.c.b16 %v138, %v137
      %v144 = vsel %vm92, %v122, 0
      %146 = vmatpush.bf16.msra.mxu0 0
      %147 = vmatpush.bf16.msra.mxu0 0
      %148 = vmatpush.bf16.msra.mxu0 0
      %149 = vmatpush.bf16.msra.mxu0 0
      %150 = vmatpush.bf16.msra.mxu0 0
      %151 = vmatpush.bf16.msra.mxu0 0
      %152 = vmatpush.bf16.msra.mxu0 %v140
      %153 = vmatpush.bf16.msra.mxu0 %v139
      %154 = vmatmul.bf16.gmra.mxu0 %v144
      %v155 = vpop.f32.mrf.mxu0
      %v156 = vadd.f32 %v129, %v155
      %v157 = vpop.f32.mrf.mxu0
      %158 = vdwg.mxu0
      %159 = vst [vmem:[#allocation9] sm:$0x3] %v156
    $region41: #{tpu_custom_call.1} parent=1 // pred_fallthru
      _
    // Predicated region
    $region42: #{tpu_custom_call.1} parent=1 // pred_check
      _
    $region43: #{tpu_custom_call.1} parent=1 // pred_check_branch
      %161 = sbr.rel (0) target = $region45
    $region44: #{tpu_custom_call.1} parent=1 // pred_region
      %163 = vsyncadd [#allocation5], 0
      %s165 = sshll.u32 [#allocation9], 4
      %s166 = int_to_ptr.vmem [resolvable:$true] %s165
      %s167 = sshll.u32 %s5, 4
      %s168 = int_to_ptr.hbm [resolvable:$true] %s167
      %170 = dma.vmem_to_hbm [thread:$0]  %s166, 32, %s168, [#allocation5]
    $region45: #{tpu_custom_call.1} parent=1 // pred_fallthru
      _
    // Predicated region
    $region46: #{tpu_custom_call.1} parent=1 // pred_check
      _
    $region47: #{tpu_custom_call.1} parent=1 // pred_check_branch
      %172 = sbr.rel (0) target = $region49
    $region48: #{tpu_custom_call.1} parent=1 // pred_region
      %174 = dma.done [#allocation5], 32
    $region49: #{tpu_custom_call.1} parent=1 // pred_fallthru
      _
    %175 = vsyncpa [#allocation4], 1
    %176 = vsyncpa [#allocation7], 1
    %177 = vsyncpa [#allocation5], 1

</llo_original>
